<compile_context>
chip_gen: v7x
topology: tpu7x:2x2x1
jax: 0.10.0
libtpu: 0.0.40
codegen_flags: <defaults>
</compile_context>

<pallas_src>
import jax
import jax.numpy as jnp
from jax.experimental import pallas as pl
from jax.experimental.pallas import tpu as pltpu


# ------------------------------------------------------------------ kernel ---

def classblock_kernel(x_ref, w1_ref, b1_ref, w2_ref, b2_ref,
                      logits_ref, feat_ref, h_ref):
    """Grid = (batch_tiles, class_tiles); class axis MUST stay inner + sequential."""
    j = pl.program_id(1)

    w2 = w2_ref[...]          # bf16 tile, fed straight to the MXU (no upcast)
    b2 = b2_ref[...]          # f32

    @pl.when(j == 0)
    def _first_class_tile():
        # GEMM1 (+BN folded on host): bf16 operands, f32 accumulation on the MXU.
        h = jnp.dot(x_ref[...], w1_ref[...],
                    preferred_element_type=jnp.float32) + b1_ref[...]
        # f = h / (||h||_2 + 1e-8); reciprocal on the (otherwise idle) EUP.
        sq = jnp.sum(h * h, axis=1, keepdims=True)
        inv_norm = pl.reciprocal(jnp.sqrt(sq) + 1e-8, approx=True)
        feat_ref[...] = (h * inv_norm).astype(feat_ref.dtype)
        # Cache bottleneck activations (in compute dtype) for the remaining class
        # tiles of this batch tile, and use the fresh value directly here.
        h_lo = h.astype(h_ref.dtype)
        h_ref[...] = h_lo
        logits_ref[...] = (jnp.dot(h_lo, w2, preferred_element_type=jnp.float32)
                           + b2).astype(logits_ref.dtype)

    @pl.when(j != 0)
    def _other_class_tiles():
        logits_ref[...] = (jnp.dot(h_ref[...], w2, preferred_element_type=jnp.float32)
                           + b2).astype(logits_ref.dtype)


# ----------------------------------------------------------------- helpers ---

def _round_up(n, m):
    return ((n + m - 1) // m) * m


def _pad2(a, rows, cols):
    pr, pc = rows - a.shape[0], cols - a.shape[1]
    if pr or pc:
        a = jnp.pad(a, ((0, pr), (0, pc)))
    return a


def _pick_tile(total, max_tile, align):
    """Largest multiple of `align` <= max_tile that divides round_up(total, align)."""
    total_p = _round_up(total, align)
    t = min(_round_up(max(max_tile, 1), align), total_p)
    while total_p % t:
        t -= align
    return t, total_p


def _vmem_limit_bytes():
    """Per-generation VMEM budget: ~3/4 of physical, capped at 100 MiB."""
    try:
        cap = int(pltpu.get_tpu_info().vmem_capacity_bytes)
        return int(min(cap * 3 // 4, 100 * 1024 * 1024))
    except Exception:
        return 48 * 1024 * 1024   # safe on v7x (64 MiB) and v5e/v6e (128 MiB)


# ----------------------------------------------------------------- wrapper ---

def classblock_forward(x, params, *, block_b=256, block_n=2048,
                       logits_dtype=jnp.float32, feat_dtype=jnp.bfloat16):
    """x: (B, input_dim). params: prepared (BN-folded, padded, cast) dict."""
    w1, b1, w2, b2 = params["w1"], params["b1"], params["w2"], params["b2"]
    num_bottleneck, class_num = params["num_bottleneck"], params["class_num"]
    B, input_dim = x.shape
    Kp, NBp = w1.shape
    Np = w2.shape[1]
    cdtype = w1.dtype
    balign = 16 if jnp.dtype(cdtype).itemsize == 2 else 8   # sublane tile for packed dtypes

    # Tiles chosen to divide the (minimally) padded extents -> no wasted FLOPs/DMA.
    TB, Bp = _pick_tile(B, block_b, balign)
    if Bp // TB < 2 and Bp > balign:
        # v7x megacore: make sure the "parallel" batch axis has >=2 tiles to shard.
        TB, Bp = _pick_tile(B, max(balign, Bp // 2), balign)
    TN, _ = _pick_tile(Np, block_n, 128)   # Np is already a multiple of 128

    xp = _pad2(x, Bp, Kp).astype(cdtype)   # ship activations in the compute dtype

    grid_b, grid_n = Bp // TB, Np // TN
    grid = (grid_b, grid_n)

    flops = int(2 * Bp * (Kp * NBp + NBp * Np))
    w2_streams = grid_b if grid_n > 1 else 1   # W2 is restreamed once per batch tile
    bytes_accessed = int(
        xp.size * xp.dtype.itemsize
        + w1.size * w1.dtype.itemsize + b1.size * b1.dtype.itemsize
        + w2_streams * (w2.size * w2.dtype.itemsize + b2.size * b2.dtype.itemsize)
        + Bp * Np * jnp.dtype(logits_dtype).itemsize
        + Bp * NBp * jnp.dtype(feat_dtype).itemsize)

    logits_p, feat_p = pl.pallas_call(
        classblock_kernel,
        grid_spec=pltpu.PrefetchScalarGridSpec(
            num_scalar_prefetch=0,
            grid=grid,
            in_specs=[
                pl.BlockSpec((TB, Kp), lambda i, j: (i, 0)),    # x tile (reused over j)
                pl.BlockSpec((Kp, NBp), lambda i, j: (0, 0)),   # W1' resident
                pl.BlockSpec((1, NBp), lambda i, j: (0, 0)),    # b1' resident
                pl.BlockSpec((NBp, TN), lambda i, j: (0, j)),   # W2 column tile
                pl.BlockSpec((1, TN), lambda i, j: (0, j)),     # b2 column tile
            ],
            out_specs=[
                pl.BlockSpec((TB, TN), lambda i, j: (i, j)),    # logits tile
                pl.BlockSpec((TB, NBp), lambda i, j: (i, 0)),   # feat (resident over j)
            ],
            scratch_shapes=[pltpu.VMEM((TB, NBp), cdtype)],     # h (bottleneck acts)
        ),
        out_shape=(
            jax.ShapeDtypeStruct((Bp, Np), logits_dtype),       # logits (padded)
            jax.ShapeDtypeStruct((Bp, NBp), feat_dtype),        # normalized feature
        ),
        compiler_params=pltpu.CompilerParams(
            # batch axis parallel (megacore), class axis sequential (h-scratch reuse).
            dimension_semantics=("parallel", "arbitrary"),
            vmem_limit_bytes=_vmem_limit_bytes()),
        cost_estimate=pl.CostEstimate(
            flops=flops, transcendentals=int(2 * Bp), bytes_accessed=bytes_accessed),
    )(xp, w1, b1, w2, b2)

    return logits_p[:B, :class_num], feat_p[:B, :num_bottleneck]


# -------------------------------------------------------- params / reference ---

def init_params(key, input_dim, num_bottleneck, class_num):
    """Raw params mirroring weights_init_kaiming / weights_init_classifier (torch)."""
    k1, k2, k3 = jax.random.split(key, 3)

    # Linear1: kaiming_normal_(a=0, mode='fan_out') -> std = sqrt(2 / num_bottleneck)
    std1 = jnp.sqrt(2.0 / num_bottleneck)
    w1_t = jax.random.normal(k1, (num_bottleneck, input_dim), jnp.float32) * std1
    w1 = w1_t.T                                                     # (in, out)
    b1 = jnp.zeros((1, num_bottleneck), jnp.float32)

    # BatchNorm1d: weight ~ N(1, 0.02), bias = 0; running stats at defaults.
    gamma = 1.0 + 0.02 * jax.random.normal(k2, (1, num_bottleneck), jnp.float32)
    beta = jnp.zeros((1, num_bottleneck), jnp.float32)
    running_mean = jnp.zeros((1, num_bottleneck), jnp.float32)
    running_var = jnp.ones((1, num_bottleneck), jnp.float32)

    # Classifier Linear: weight ~ N(0, 0.001), bias = 0.
    w2_t = 0.001 * jax.random.normal(k3, (class_num, num_bottleneck), jnp.float32)
    w2 = w2_t.T                                                     # (in, out)
    b2 = jnp.zeros((1, class_num), jnp.float32)

    return dict(w1=w1, b1=b1, gamma=gamma, beta=beta,
                running_mean=running_mean, running_var=running_var,
                w2=w2, b2=b2)


def prepare_params(raw, weight_dtype=jnp.bfloat16):
    """Fold eval-mode BN into Linear1, ZERO-pad feature dims to 128 multiples, and
    cast weights for shipping. Done once on the host (not per forward call)."""
    eps = 1e-5
    scale = raw["gamma"] / jnp.sqrt(raw["running_var"] + eps)        # (1, nb)
    w1f = raw["w1"] * scale                                          # (in, nb)
    b1f = (raw["b1"] - raw["running_mean"]) * scale + raw["beta"]

    input_dim, num_bottleneck = w1f.shape
    class_num = raw["w2"].shape[1]
    Kp = _round_up(input_dim, 128)
    NBp = _round_up(num_bottleneck, 128)
    Np = _round_up(class_num, 128)

    return dict(
        w1=_pad2(w1f, Kp, NBp).astype(weight_dtype),
        b1=_pad2(b1f, 1, NBp).astype(jnp.float32),
        w2=_pad2(raw["w2"], NBp, Np).astype(weight_dtype),
        b2=_pad2(raw["b2"], 1, Np).astype(jnp.float32),
        input_dim=input_dim, num_bottleneck=num_bottleneck, class_num=class_num,
    )


def reference_forward(x, params):
    """Pure-JAX reference on the same prepared params, mirroring the kernel's
    precision path (bf16 matmul operands, f32 accumulation, f32 norm)."""
    cdtype = params["w1"].dtype
    Kp = params["w1"].shape[0]
    nb, nc = params["num_bottleneck"], params["class_num"]
    hp = jax.lax.Precision.HIGHEST

    xp = _pad2(x, x.shape[0], Kp).astype(cdtype).astype(jnp.float32)
    w1 = params["w1"].astype(jnp.float32)
    w2 = params["w2"].astype(jnp.float32)

    h = jnp.dot(xp, w1, precision=hp) + params["b1"]
    f = h / (jnp.linalg.norm(h, axis=1, keepdims=True) + 1e-8)
    logits = jnp.dot(h.astype(cdtype).astype(jnp.float32), w2, precision=hp) + params["b2"]
    return logits[:, :nc], f[:, :nb]


# -------------------------------------------------------------------- main ---

if __name__ == "__main__":
    B, input_dim, num_bottleneck, class_num = 48, 96, 160, 200

    key = jax.random.PRNGKey(0)
    kx, kp = jax.random.split(key)
    x = jax.random.normal(kx, (B, input_dim), jnp.float32)

    raw = init_params(kp, input_dim, num_bottleneck, class_num)
    params = prepare_params(raw, weight_dtype=jnp.bfloat16)

    # Small tiles so the demo exercises both grid axes (3 batch tiles x 2 class tiles).
    logits, feat = classblock_forward(x, params, block_b=16, block_n=128)
    logits = jax.block_until_ready(logits)
    feat = jax.block_until_ready(feat)

    ref_logits, ref_feat = reference_forward(x, params)
    assert logits.shape == (B, class_num) and feat.shape == (B, num_bottleneck)
    assert jnp.allclose(logits.astype(jnp.float32), ref_logits, atol=2e-3, rtol=2e-3), \
        float(jnp.max(jnp.abs(logits.astype(jnp.float32) - ref_logits)))
    assert jnp.allclose(feat.astype(jnp.float32), ref_feat, atol=5e-3, rtol=5e-3), \
        float(jnp.max(jnp.abs(feat.astype(jnp.float32) - ref_feat)))

    print("KERNEL_OK")
</pallas_src>

<mosaic_0001>
module attributes {stable_mosaic.version = 11 : i64} {
  func.func @classblock_kernel(%arg0: i32, %arg1: i32, %arg2: memref<16x128xbf16, #tpu.memory_space<vmem>>, %arg3: memref<128x256xbf16, #tpu.memory_space<vmem>>, %arg4: memref<1x256xf32, #tpu.memory_space<vmem>>, %arg5: memref<256x128xbf16, #tpu.memory_space<vmem>>, %arg6: memref<1x128xf32, #tpu.memory_space<vmem>>, %arg7: memref<16x128xf32, #tpu.memory_space<vmem>>, %arg8: memref<16x256xbf16, #tpu.memory_space<vmem>>, %arg9: memref<16x256xbf16, #tpu.memory_space<vmem>>) attributes {dimension_semantics = [#tpu.dimension_semantics<parallel>, #tpu.dimension_semantics<arbitrary>], iteration_bounds = array<i64: 3, 2>, scalar_prefetch = 0 : i64, scratch_operands = 1 : i64, tpu.core_type = #tpu.core_type<tc>, window_params = [{transform_indices = @transform_0, window_bounds = array<i64: 16, 128>}, {pipeline_mode = #tpu.pipeline_mode<synchronous>, transform_indices = @transform_1, window_bounds = array<i64: 128, 256>}, {pipeline_mode = #tpu.pipeline_mode<synchronous>, transform_indices = @transform_2, window_bounds = array<i64: 1, 256>}, {transform_indices = @transform_3, window_bounds = array<i64: 256, 128>}, {transform_indices = @transform_4, window_bounds = array<i64: 1, 128>}, {transform_indices = @transform_5, window_bounds = array<i64: 16, 128>}, {transform_indices = @transform_6, window_bounds = array<i64: 16, 256>}]} {
    %c0 = arith.constant 0 : index
    %c0_0 = arith.constant 0 : index
    %0 = vector.load %arg5[%c0, %c0_0] : memref<256x128xbf16, #tpu.memory_space<vmem>>, vector<256x128xbf16>
    %c0_1 = arith.constant 0 : index
    %c0_2 = arith.constant 0 : index
    %1 = vector.load %arg6[%c0_1, %c0_2] : memref<1x128xf32, #tpu.memory_space<vmem>>, vector<1x128xf32>
    %c0_i32 = arith.constant 0 : i32
    %2 = arith.cmpi eq, %arg1, %c0_i32 : i32
    %3 = arith.extui %2 : i1 to i32
    %c0_i32_3 = arith.constant 0 : i32
    %4 = arith.cmpi ne, %3, %c0_i32_3 : i32
    scf.if %4 {
      %c0_6 = arith.constant 0 : index
      %c0_7 = arith.constant 0 : index
      %8 = vector.load %arg2[%c0_6, %c0_7] : memref<16x128xbf16, #tpu.memory_space<vmem>>, vector<16x128xbf16>
      %c0_8 = arith.constant 0 : index
      %c0_9 = arith.constant 0 : index
      %9 = vector.load %arg3[%c0_8, %c0_9] : memref<128x256xbf16, #tpu.memory_space<vmem>>, vector<128x256xbf16>
      %cst = arith.constant dense<0.000000e+00> : vector<16x256xf32>
      %10 = tpu.matmul %8, %9, %cst {dimension_numbers = #tpu.dot_dimension_numbers<[1], [0], [0], [1], [0, 0, 1, 1], [], []>} : vector<16x128xbf16>, vector<128x256xbf16>, vector<16x256xf32> -> vector<16x256xf32>
      %c0_10 = arith.constant 0 : index
      %c0_11 = arith.constant 0 : index
      %11 = vector.load %arg4[%c0_10, %c0_11] : memref<1x256xf32, #tpu.memory_space<vmem>>, vector<1x256xf32>
      %12 = vector.broadcast %11 : vector<1x256xf32> to vector<16x256xf32>
      %13 = arith.addf %10, %12 : vector<16x256xf32>
      %14 = arith.mulf %13, %13 : vector<16x256xf32>
      %cst_12 = arith.constant dense<0.000000e+00> : vector<16xf32>
      %15 = vector.multi_reduction <add>, %14, %cst_12 [1] : vector<16x256xf32> to vector<16xf32>
      %16 = vector.shape_cast %15 : vector<16xf32> to vector<16x1xf32>
      %17 = math.sqrt %16 : vector<16x1xf32>
      %cst_13 = arith.constant 9.99999993E-9 : f32
      %18 = vector.broadcast %cst_13 : f32 to vector<16x1xf32>
      %19 = arith.addf %17, %18 : vector<16x1xf32>
      %20 = tpu.reciprocal %19 {approx = true} : vector<16x1xf32> -> vector<16x1xf32>
      %21 = vector.broadcast %20 : vector<16x1xf32> to vector<16x256xf32>
      %22 = arith.mulf %13, %21 : vector<16x256xf32>
      %23 = arith.truncf %22 : vector<16x256xf32> to vector<16x256xbf16>
      %c0_14 = arith.constant 0 : index
      %c0_15 = arith.constant 0 : index
      %24 = vector.load %arg8[%c0_14, %c0_15] : memref<16x256xbf16, #tpu.memory_space<vmem>>, vector<16x256xbf16>
      tpu.vector_store %arg8[%c0_14, %c0_15], %23 {strides = array<i32>} : memref<16x256xbf16, #tpu.memory_space<vmem>>, vector<16x256xbf16>,
      %25 = arith.truncf %13 : vector<16x256xf32> to vector<16x256xbf16>
      %c0_16 = arith.constant 0 : index
      %c0_17 = arith.constant 0 : index
      %26 = vector.load %arg9[%c0_16, %c0_17] : memref<16x256xbf16, #tpu.memory_space<vmem>>, vector<16x256xbf16>
      tpu.vector_store %arg9[%c0_16, %c0_17], %25 {strides = array<i32>} : memref<16x256xbf16, #tpu.memory_space<vmem>>, vector<16x256xbf16>,
      %cst_18 = arith.constant dense<0.000000e+00> : vector<16x128xf32>
      %27 = tpu.matmul %25, %0, %cst_18 {dimension_numbers = #tpu.dot_dimension_numbers<[1], [0], [0], [1], [0, 0, 1, 1], [], []>} : vector<16x256xbf16>, vector<256x128xbf16>, vector<16x128xf32> -> vector<16x128xf32>
      %28 = vector.broadcast %1 : vector<1x128xf32> to vector<16x128xf32>
      %29 = arith.addf %27, %28 : vector<16x128xf32>
      %c0_19 = arith.constant 0 : index
      %c0_20 = arith.constant 0 : index
      %30 = vector.load %arg7[%c0_19, %c0_20] : memref<16x128xf32, #tpu.memory_space<vmem>>, vector<16x128xf32>
      tpu.vector_store %arg7[%c0_19, %c0_20], %29 {strides = array<i32>} : memref<16x128xf32, #tpu.memory_space<vmem>>, vector<16x128xf32>,
    } else {
    }
    %c0_i32_4 = arith.constant 0 : i32
    %5 = arith.cmpi ne, %arg1, %c0_i32_4 : i32
    %6 = arith.extui %5 : i1 to i32
    %c0_i32_5 = arith.constant 0 : i32
    %7 = arith.cmpi ne, %6, %c0_i32_5 : i32
    scf.if %7 {
      %c0_6 = arith.constant 0 : index
      %c0_7 = arith.constant 0 : index
      %8 = vector.load %arg9[%c0_6, %c0_7] : memref<16x256xbf16, #tpu.memory_space<vmem>>, vector<16x256xbf16>
      %cst = arith.constant dense<0.000000e+00> : vector<16x128xf32>
      %9 = tpu.matmul %8, %0, %cst {dimension_numbers = #tpu.dot_dimension_numbers<[1], [0], [0], [1], [0, 0, 1, 1], [], []>} : vector<16x256xbf16>, vector<256x128xbf16>, vector<16x128xf32> -> vector<16x128xf32>
      %10 = vector.broadcast %1 : vector<1x128xf32> to vector<16x128xf32>
      %11 = arith.addf %9, %10 : vector<16x128xf32>
      %c0_8 = arith.constant 0 : index
      %c0_9 = arith.constant 0 : index
      %12 = vector.load %arg7[%c0_8, %c0_9] : memref<16x128xf32, #tpu.memory_space<vmem>>, vector<16x128xf32>
      tpu.vector_store %arg7[%c0_8, %c0_9], %11 {strides = array<i32>} : memref<16x128xf32, #tpu.memory_space<vmem>>, vector<16x128xf32>,
    } else {
    }
    return
  }
  func.func @transform_0(%arg0: i32, %arg1: i32) -> (i32, i32) {
    %c0_i32 = arith.constant 0 : i32
    %c0_i32_0 = arith.constant 0 : i32
    return %arg0, %c0_i32 : i32, i32
  }
  func.func @transform_1(%arg0: i32, %arg1: i32) -> (i32, i32) {
    %c0_i32 = arith.constant 0 : i32
    %c0_i32_0 = arith.constant 0 : i32
    %c0_i32_1 = arith.constant 0 : i32
    return %c0_i32, %c0_i32_0 : i32, i32
  }
  func.func @transform_2(%arg0: i32, %arg1: i32) -> (i32, i32) {
    %c0_i32 = arith.constant 0 : i32
    %c0_i32_0 = arith.constant 0 : i32
    %c0_i32_1 = arith.constant 0 : i32
    return %c0_i32, %c0_i32_0 : i32, i32
  }
  func.func @transform_3(%arg0: i32, %arg1: i32) -> (i32, i32) {
    %c0_i32 = arith.constant 0 : i32
    %c0_i32_0 = arith.constant 0 : i32
    return %c0_i32, %arg1 : i32, i32
  }
  func.func @transform_4(%arg0: i32, %arg1: i32) -> (i32, i32) {
    %c0_i32 = arith.constant 0 : i32
    %c0_i32_0 = arith.constant 0 : i32
    return %c0_i32, %arg1 : i32, i32
  }
  func.func @transform_5(%arg0: i32, %arg1: i32) -> (i32, i32) {
    %c0_i32 = arith.constant 0 : i32
    return %arg0, %arg1 : i32, i32
  }
  func.func @transform_6(%arg0: i32, %arg1: i32) -> (i32, i32) {
    %c0_i32 = arith.constant 0 : i32
    %c0_i32_0 = arith.constant 0 : i32
    return %arg0, %c0_i32 : i32, i32
  }
}

</mosaic_0001>

<llo_original>
// kernel: tpu_custom_call.1
$region0: #{tpu_custom_call.1}
  #allocation0 [shape = 'u32[]', space=smem, size = 0x4, offset = 0x4, fixed_abs, tag = 'smem constant byte address 0x4 - core index']
  #allocation1 [shape = 'u32[144,128]{1,0:T(1,128)}', space=vmem, size = 0x12000, scoped, tag = 'internal scratch']
  #allocation2 [shape = 'bf16[16,256]{1,0:T(16,128)(2,1)}', space=vmem, size = 0x2000, scoped, tag = 'scratch operand']
  %s0 = inlined_call_operand.hbm [shape: bf16[48,128], index: 0, kind: input, shape index: {}]
  %s1 = inlined_call_operand.hbm [shape: bf16[128,256], index: 1, kind: input, shape index: {}]
  %s2 = inlined_call_operand.vmem [shape: f32[1,256], index: 2, kind: input, shape index: {}]
  %s3 = inlined_call_operand.hbm [shape: bf16[256,256], index: 3, kind: input, shape index: {}]
  %s4 = inlined_call_operand.vmem [shape: f32[1,256], index: 4, kind: input, shape index: {}]
  %s5 = inlined_call_operand.hbm [shape: f32[48,256], index: 5, kind: output, shape index: {0}]
  %s6 = inlined_call_operand.hbm [shape: bf16[48,256], index: 6, kind: output, shape index: {1}]
  %7 = xla_tuple %s5, %s6
  %s8 = sld [smem:[#allocation0]]
  $region81: #{tpu_custom_call.1} parent=0
    _
  %s10 = ssub.s32 1, %s8
  %s11 = scalar_select 0, %s10, %s8
  $region1: #{tpu_custom_call.1} parent=0
    #allocation3 [shape = 'u8[8192]{0}', space=vmem, size = 0x2000, scoped, tag = 'input window, operand 0']
    #allocation4 [shape = 's32[2]{0}', space=sflag, size = 0x8, scoped, tag = 'scoped memory for tpu_custom_call.1']
    #allocation5 [shape = 's32[2]{0}', space=sflag, size = 0x8, scoped, tag = 'scoped memory for tpu_custom_call.1']
    #allocation6 [shape = 'u8[65536]{0}', space=vmem, size = 0x10000, scoped, tag = 'input window, operand 1, single buffered']
    #allocation7 [shape = 's32[1]{0}', space=sflag, size = 0x4, scoped, tag = 'scoped memory for tpu_custom_call.1']
    #allocation8 [shape = 'u8[131072]{0}', space=vmem, size = 0x20000, scoped, tag = 'input window, operand 3']
    #allocation9 [shape = 'u8[16384]{0}', space=vmem, size = 0x4000, scoped, tag = 'output window, operand 0']
    #allocation10 [shape = 'u8[16384]{0}', space=vmem, size = 0x4000, scoped, tag = 'output window, operand 1']
    #allocation11 [shape = 's32[2]{0}', space=sflag, size = 0x8, scoped, tag = 'scoped memory for tpu_custom_call.1']
    %12 = vsyncpa [#allocation4], 0
    %s13 = scalar_lea.sflag [#allocation4], 1
    %14 = vsyncpa %s13, 0
    %15 = vsyncpa [#allocation7], 0
    %16 = vsyncpa [#allocation5], 0
    %s17 = scalar_lea.sflag [#allocation5], 1
    %18 = vsyncpa %s17, 0
    %19 = vsyncpa [#allocation11], 0
    %s20 = scalar_lea.sflag [#allocation11], 1
    %21 = vsyncpa %s20, 0
    loop: start=0, step=1, limit=8
    $region2: #{tpu_custom_call.1} parent=1 // loop_pre_header
      _
    $region3: #{tpu_custom_call.1} parent=1 // loop_header
      %s23 = sphi 0, %s27
      %p24 = scmp.ge.s32.totalorder %s23, 8
      %s30 = sphi 0, %s42
      %s31 = sphi 0, %s38
      %s32 = sphi 0, %s30
      %s33 = sphi 0, %s31
      %s34 = sphi 0, %s32
      %s35 = sphi 0, %s33
      %s45 = sphi 0, %s47
      %s48 = sphi 0, %s45
      %s49 = sphi 0, %s48
      %s65 = sphi 0, %s49
      %s69 = sphi 0, %s69
      %s71 = sphi 0, %s69
      %s72 = sphi 0, %s71
      %s86 = sphi 0, %s72
      %s90 = sphi 0, %s90
      %s92 = sphi 0, %s90
      %s93 = sphi 0, %s92
      %s107 = sphi 0, %s93
      %s113 = sphi 0, %s115
      %s116 = sphi 0, %s113
      %s117 = sphi 0, %s116
      %s133 = sphi 0, %s117
      %s139 = sphi 0, %s141
      %s142 = sphi 0, %s139
      %s143 = sphi 0, %s142
      %s159 = sphi 0, %s143
      %s167 = sphi 0, %s169
      %s170 = sphi 0, %s167
      %s171 = sphi 0, %s170
      %s187 = sphi 0, %s171
      %s193 = sphi 0, %s195
      %s196 = sphi 0, %s193
      %s197 = sphi 0, %s196
      %s213 = sphi 0, %s197
    $region4: #{tpu_custom_call.1} parent=1 // loop_header_branch
      %26 = sbr.rel (%p24) target = $region8
    $region5: #{tpu_custom_call.1} parent=1 // loop_body
      %s28 = ssub.s32 %s23, 1
      %s29 = ssub.s32 %s23, 2
      %s36 = sadd.s32 1, %s31
      %p37 = scmp.ge.s32.totalorder %s36, 2
      %s38 = scalar_select %p37, 0, %s36
      %s39 = sadd.s32 1, %s30
      %s40 = scalar_select %p37, %s39, %s30
      %p41 = scmp.ge.s32.totalorder %s40, 3
      %s42 = scalar_select %p41, 0, %s40
      %s43 = ssub.s32 %s30, %s42
      %p44 = scmp.eq.s32.totalorder %s43, 0
      %s46 = sadd.s32 %s45, 1
      %s47 = scalar_select %p44, %s45, %s46
      %p50 = pneg %p44
      %p51 = scmp.eq.s32.totalorder %s23, 5
      %p52 = por %p50, %p51
      %p53 = scmp.ne.s32.totalorder %s45, %s48
      %p54 = scmp.eq.s32.totalorder %s23, 0
      %p55 = por %p53, %p54
      %p56 = scmp.ne.s32.totalorder %s45, %s48
      %p57 = scmp.eq.s32.totalorder %s28, 5
      %p58 = por %p56, %p57
      %p59 = scmp.ne.s32.totalorder %s48, %s49
      %p60 = scmp.eq.s32.totalorder %s28, 0
      %p61 = por %p59, %p60
      %p62 = scmp.ne.s32.totalorder %s48, %s49
      %p63 = scmp.eq.s32.totalorder %s29, 5
      %p64 = por %p62, %p63
      %p66 = scmp.ne.s32.totalorder %s49, %s65
      %p67 = scmp.eq.s32.totalorder %s29, 0
      %p68 = por %p66, %p67
      %s70 = sadd.s32 %s69, 1
      %p73 = scmp.eq.s32.totalorder %s23, 5
      %p74 = scmp.ne.s32.totalorder %s69, %s71
      %p75 = scmp.eq.s32.totalorder %s23, 0
      %p76 = por %p74, %p75
      %p77 = scmp.ne.s32.totalorder %s69, %s71
      %p78 = scmp.eq.s32.totalorder %s28, 5
      %p79 = por %p77, %p78
      %p80 = scmp.ne.s32.totalorder %s71, %s72
      %p81 = scmp.eq.s32.totalorder %s28, 0
      %p82 = por %p80, %p81
      %p83 = scmp.ne.s32.totalorder %s71, %s72
      %p84 = scmp.eq.s32.totalorder %s29, 5
      %p85 = por %p83, %p84
      %p87 = scmp.ne.s32.totalorder %s72, %s86
      %p88 = scmp.eq.s32.totalorder %s29, 0
      %p89 = por %p87, %p88
      %s91 = sadd.s32 %s90, 1
      %p94 = scmp.eq.s32.totalorder %s23, 5
      %p95 = scmp.ne.s32.totalorder %s90, %s92
      %p96 = scmp.eq.s32.totalorder %s23, 0
      %p97 = por %p95, %p96
      %p98 = scmp.ne.s32.totalorder %s90, %s92
      %p99 = scmp.eq.s32.totalorder %s28, 5
      %p100 = por %p98, %p99
      %p101 = scmp.ne.s32.totalorder %s92, %s93
      %p102 = scmp.eq.s32.totalorder %s28, 0
      %p103 = por %p101, %p102
      %p104 = scmp.ne.s32.totalorder %s92, %s93
      %p105 = scmp.eq.s32.totalorder %s29, 5
      %p106 = por %p104, %p105
      %p108 = scmp.ne.s32.totalorder %s93, %s107
      %p109 = scmp.eq.s32.totalorder %s29, 0
      %p110 = por %p108, %p109
      %s111 = ssub.s32 %s31, %s38
      %p112 = scmp.eq.s32.totalorder %s111, 0
      %s114 = sadd.s32 %s113, 1
      %s115 = scalar_select %p112, %s113, %s114
      %p118 = pneg %p112
      %p119 = scmp.eq.s32.totalorder %s23, 5
      %p120 = por %p118, %p119
      %p121 = scmp.ne.s32.totalorder %s113, %s116
      %p122 = scmp.eq.s32.totalorder %s23, 0
      %p123 = por %p121, %p122
      %p124 = scmp.ne.s32.totalorder %s113, %s116
      %p125 = scmp.eq.s32.totalorder %s28, 5
      %p126 = por %p124, %p125
      %p127 = scmp.ne.s32.totalorder %s116, %s117
      %p128 = scmp.eq.s32.totalorder %s28, 0
      %p129 = por %p127, %p128
      %p130 = scmp.ne.s32.totalorder %s116, %s117
      %p131 = scmp.eq.s32.totalorder %s29, 5
      %p132 = por %p130, %p131
      %p134 = scmp.ne.s32.totalorder %s117, %s133
      %p135 = scmp.eq.s32.totalorder %s29, 0
      %p136 = por %p134, %p135
      %s137 = ssub.s32 %s31, %s38
      %p138 = scmp.eq.s32.totalorder %s137, 0
      %s140 = sadd.s32 %s139, 1
      %s141 = scalar_select %p138, %s139, %s140
      %p144 = pneg %p138
      %p145 = scmp.eq.s32.totalorder %s23, 5
      %p146 = por %p144, %p145
      %p147 = scmp.ne.s32.totalorder %s139, %s142
      %p148 = scmp.eq.s32.totalorder %s23, 0
      %p149 = por %p147, %p148
      %p150 = scmp.ne.s32.totalorder %s139, %s142
      %p151 = scmp.eq.s32.totalorder %s28, 5
      %p152 = por %p150, %p151
      %p153 = scmp.ne.s32.totalorder %s142, %s143
      %p154 = scmp.eq.s32.totalorder %s28, 0
      %p155 = por %p153, %p154
      %p156 = scmp.ne.s32.totalorder %s142, %s143
      %p157 = scmp.eq.s32.totalorder %s29, 5
      %p158 = por %p156, %p157
      %p160 = scmp.ne.s32.totalorder %s143, %s159
      %p161 = scmp.eq.s32.totalorder %s29, 0
      %p162 = por %p160, %p161
      %s163 = ssub.s32 %s30, %s42
      %s164 = ssub.s32 %s31, %s38
      %s165 = sor.u32 %s163, %s164
      %p166 = scmp.eq.s32.totalorder %s165, 0
      %s168 = sadd.s32 %s167, 1
      %s169 = scalar_select %p166, %s167, %s168
      %p172 = pneg %p166
      %p173 = scmp.eq.s32.totalorder %s23, 5
      %p174 = por %p172, %p173
      %p175 = scmp.ne.s32.totalorder %s167, %s170
      %p176 = scmp.eq.s32.totalorder %s23, 0
      %p177 = por %p175, %p176
      %p178 = scmp.ne.s32.totalorder %s167, %s170
      %p179 = scmp.eq.s32.totalorder %s28, 5
      %p180 = por %p178, %p179
      %p181 = scmp.ne.s32.totalorder %s170, %s171
      %p182 = scmp.eq.s32.totalorder %s28, 0
      %p183 = por %p181, %p182
      %p184 = scmp.ne.s32.totalorder %s170, %s171
      %p185 = scmp.eq.s32.totalorder %s29, 5
      %p186 = por %p184, %p185
      %p188 = scmp.ne.s32.totalorder %s171, %s187
      %p189 = scmp.eq.s32.totalorder %s29, 0
      %p190 = por %p188, %p189
      %s191 = ssub.s32 %s30, %s42
      %p192 = scmp.eq.s32.totalorder %s191, 0
      %s194 = sadd.s32 %s193, 1
      %s195 = scalar_select %p192, %s193, %s194
      %p198 = pneg %p192
      %p199 = scmp.eq.s32.totalorder %s23, 5
      %p200 = por %p198, %p199
      %p201 = scmp.ne.s32.totalorder %s193, %s196
      %p202 = scmp.eq.s32.totalorder %s23, 0
      %p203 = por %p201, %p202
      %p204 = scmp.ne.s32.totalorder %s193, %s196
      %p205 = scmp.eq.s32.totalorder %s28, 5
      %p206 = por %p204, %p205
      %p207 = scmp.ne.s32.totalorder %s196, %s197
      %p208 = scmp.eq.s32.totalorder %s28, 0
      %p209 = por %p207, %p208
      %p210 = scmp.ne.s32.totalorder %s196, %s197
      %p211 = scmp.eq.s32.totalorder %s29, 5
      %p212 = por %p210, %p211
      %p214 = scmp.ne.s32.totalorder %s197, %s213
      %p215 = scmp.eq.s32.totalorder %s29, 0
      %p216 = por %p214, %p215
      %p217 = scmp.le.s32.totalorder 1, %s23
      %p218 = scmp.lt.s32.totalorder %s23, 7
      %p219 = pnand %p217, %p218
      %p220 = pneg %p219
      // Predicated region
      $region9: #{tpu_custom_call.1} parent=5 // pred_check
        _
      $region10: #{tpu_custom_call.1} parent=5 // pred_check_branch
        %222 = sbr.rel (%p219) target = $region12
      $region11: #{tpu_custom_call.1} parent=5 // pred_region
        %s223 = ssub.s32 %s23, 1
        // Predicated region
        $region13: #{tpu_custom_call.1} parent=11 // pred_check
          %p224 = pneg %p82
        $region14: #{tpu_custom_call.1} parent=11 // pred_check_branch
          %226 = sbr.rel (%p224) target = $region16
        $region15: #{tpu_custom_call.1} parent=11 // pred_region
          %s228 = ssub.s32 2048, 2048
          %229 = vsyncadd [#allocation7], %s228
          %s230 = sshll.u32 [#allocation6], 4
          %s231 = int_to_ptr.vmem [resolvable:$true] %s230
          %236 = dma.hbm_to_vmem [thread:$0]  %s1, 2048, %s231, [#allocation7], 128, 128, 8
        $region16: #{tpu_custom_call.1} parent=11 // pred_fallthru
          _
        // Predicated region
        $region17: #{tpu_custom_call.1} parent=11 // pred_check
          %p237 = pneg %p103
        $region18: #{tpu_custom_call.1} parent=11 // pred_check_branch
          %239 = sbr.rel (%p237) target = $region20
        $region19: #{tpu_custom_call.1} parent=11 // pred_region
          _
        $region20: #{tpu_custom_call.1} parent=11 // pred_fallthru
          _
      $region12: #{tpu_custom_call.1} parent=5 // pred_fallthru
        _
      %p240 = scmp.lt.s32.totalorder %s23, 6
      // Predicated region
      $region21: #{tpu_custom_call.1} parent=5 // pred_check
        %p241 = pneg %p240
      $region22: #{tpu_custom_call.1} parent=5 // pred_check_branch
        %243 = sbr.rel (%p241) target = $region24
      $region23: #{tpu_custom_call.1} parent=5 // pred_region
        // Predicated region
        $region25: #{tpu_custom_call.1} parent=23 // pred_check
          %p244 = pneg %p55
        $region26: #{tpu_custom_call.1} parent=23 // pred_check_branch
          %246 = sbr.rel (%p244) target = $region28
        $region27: #{tpu_custom_call.1} parent=23 // pred_region
          %s247 = sand.u32 %s23, 1
          %s248 = scalar_lea.sflag [#allocation4], %s247
          %s249 = sand.u32 %s45, 1
          %s250 = smul.addr %s249, 8
          %s251 = scalar_lea.vmem [#allocation3], %s250
          %s252 = smul.u32 2, %s30
          %s254 = ssub.s32 128, 128
          %255 = vsyncadd %s248, %s254
          %s256 = smul.addr %s252, 64
          %s257 = scalar_lea.hbm %s0, %s256
          %s258 = sshll.u32 %s251, 4
          %s259 = int_to_ptr.vmem [resolvable:$true] %s258
          %264 = dma.hbm_to_vmem [thread:$0]  %s257, 128, %s259, %s248, 64, 64, 4
        $region28: #{tpu_custom_call.1} parent=23 // pred_fallthru
          _
        // Predicated region
        $region29: #{tpu_custom_call.1} parent=23 // pred_check
          %p265 = pneg %p123
        $region30: #{tpu_custom_call.1} parent=23 // pred_check_branch
          %267 = sbr.rel (%p265) target = $region32
        $region31: #{tpu_custom_call.1} parent=23 // pred_region
          %s268 = sand.u32 %s23, 1
          %s269 = scalar_lea.sflag [#allocation4], %s268
          %s270 = sand.u32 %s113, 1
          %s271 = smul.addr %s270, 128
          %s272 = scalar_lea.vmem [#allocation8], %s271
          %s274 = ssub.s32 2048, 2048
          %275 = vsyncadd %s269, %s274
          %s276 = smul.addr %s31, 64
          %s277 = scalar_lea.hbm %s3, %s276
          %s278 = sshll.u32 %s272, 4
          %s279 = int_to_ptr.vmem [resolvable:$true] %s278
          %284 = dma.hbm_to_vmem [thread:$0]  %s277, 2048, %s279, %s269, 128, 64, 4
        $region32: #{tpu_custom_call.1} parent=23 // pred_fallthru
          _
        // Predicated region
        $region33: #{tpu_custom_call.1} parent=23 // pred_check
          %p285 = pneg %p149
        $region34: #{tpu_custom_call.1} parent=23 // pred_check_branch
          %287 = sbr.rel (%p285) target = $region36
        $region35: #{tpu_custom_call.1} parent=23 // pred_region
          %p288 = scmp.lt.s32.totalorder %s31, 1
          %s289 = scalar_select %p288, %s31, 1
          %s290 = scalar_lea.vmem %s4, %s289
        $region36: #{tpu_custom_call.1} parent=23 // pred_fallthru
          _
      $region24: #{tpu_custom_call.1} parent=5 // pred_fallthru
        _
      %p291 = scmp.le.s32.totalorder 1, %s23
      %p292 = scmp.lt.s32.totalorder %s23, 7
      %p293 = pnand %p291, %p292
      %p294 = pneg %p293
      // Predicated region
      $region37: #{tpu_custom_call.1} parent=5 // pred_check
        _
      $region38: #{tpu_custom_call.1} parent=5 // pred_check_branch
        %296 = sbr.rel (%p293) target = $region40
      $region39: #{tpu_custom_call.1} parent=5 // pred_region
        %s297 = ssub.s32 %s23, 1
        %s298 = sand.u32 %s28, 1
        %s299 = scalar_lea.sflag [#allocation4], %s298
        %s300 = sand.u32 %s48, 1
        %s301 = smul.addr %s300, 8
        %s302 = scalar_lea.vmem [#allocation3], %s301
        // Predicated region
        $region41: #{tpu_custom_call.1} parent=39 // pred_check
          %p303 = pneg %p61
        $region42: #{tpu_custom_call.1} parent=39 // pred_check_branch
          %305 = sbr.rel (%p303) target = $region44
        $region43: #{tpu_custom_call.1} parent=39 // pred_region
          %306 = dma.done %s299, 128
        $region44: #{tpu_custom_call.1} parent=39 // pred_fallthru
          _
        // Predicated region
        $region45: #{tpu_custom_call.1} parent=39 // pred_check
          %p307 = pneg %p82
        $region46: #{tpu_custom_call.1} parent=39 // pred_check_branch
          %309 = sbr.rel (%p307) target = $region48
        $region47: #{tpu_custom_call.1} parent=39 // pred_region
          %310 = dma.done [#allocation7], 2048
        $region48: #{tpu_custom_call.1} parent=39 // pred_fallthru
          _
        %s311 = sand.u32 %s28, 1
        %s312 = scalar_lea.sflag [#allocation4], %s311
        %s313 = sand.u32 %s116, 1
        %s314 = smul.addr %s313, 128
        %s315 = scalar_lea.vmem [#allocation8], %s314
        // Predicated region
        $region49: #{tpu_custom_call.1} parent=39 // pred_check
          %p316 = pneg %p129
        $region50: #{tpu_custom_call.1} parent=39 // pred_check_branch
          %318 = sbr.rel (%p316) target = $region52
        $region51: #{tpu_custom_call.1} parent=39 // pred_region
          %319 = dma.done %s312, 2048
        $region52: #{tpu_custom_call.1} parent=39 // pred_fallthru
          _
        %s320 = sand.u32 %s28, 1
        %s321 = scalar_lea.sflag [#allocation4], %s320
        %s322 = sand.u32 %s48, 1
        %s323 = smul.addr %s322, 8
        %s324 = scalar_lea.vmem [#allocation3], %s323
        %p325 = pneg %p61
        %p326 = pneg %p58
        %p327 = pneg %p82
        %p328 = pneg %p79
        %p329 = pneg %p103
        %p330 = pneg %p100
        %s331 = sand.u32 %s28, 1
        %s332 = scalar_lea.sflag [#allocation4], %s331
        %s333 = sand.u32 %s116, 1
        %s334 = smul.addr %s333, 128
        %s335 = scalar_lea.vmem [#allocation8], %s334
        %p336 = pneg %p129
        %p337 = pneg %p126
        %p338 = scmp.lt.s32.totalorder %s33, 1
        %s339 = scalar_select %p338, %s33, 1
        %s340 = scalar_lea.vmem %s4, %s339
        %p341 = pneg %p155
        %p342 = pneg %p152
        %p343 = pneg %p183
        %p344 = pneg %p180
        %s345 = sand.u32 %s170, 1
        %s346 = scalar_lea.sflag [#allocation5], %s345
        %s347 = sand.u32 %s170, 1
        %s348 = smul.addr %s347, 16
        %s349 = scalar_lea.vmem [#allocation9], %s348
        %p350 = pneg %p209
        %p351 = pneg %p206
        %s352 = sand.u32 %s196, 1
        %s353 = scalar_lea.sflag [#allocation11], %s352
        %s354 = sand.u32 %s196, 1
        %s355 = smul.addr %s354, 16
        %s356 = scalar_lea.vmem [#allocation10], %s355
        %s357 = smul.u32 2, %s32
        %p358 = scmp.lt.s32.totalorder %s33, 1
        %s359 = scalar_select %p358, %s33, 1
        %s360 = scalar_lea.vmem %s4, %s359
        %s361 = smul.u32 2, %s32
        %s362 = smul.u32 2, %s32
        %v364 = vld [vmem:[%s315] sm:$0xf]
        %v365 = vld [vmem:[%s315 + $0x4] sm:$0xf]
        %v366 = vld [vmem:[%s315 + $0x8] sm:$0xf]
        %v367 = vld [vmem:[%s315 + $0xc] sm:$0xf]
        %v368 = vld [vmem:[%s315 + $0x10] sm:$0xf]
        %v369 = vld [vmem:[%s315 + $0x14] sm:$0xf]
        %v370 = vld [vmem:[%s315 + $0x18] sm:$0xf]
        %v371 = vld [vmem:[%s315 + $0x1c] sm:$0xf]
        %v372 = vld [vmem:[%s315 + $0x20] sm:$0xf]
        %v373 = vld [vmem:[%s315 + $0x24] sm:$0xf]
        %v374 = vld [vmem:[%s315 + $0x28] sm:$0xf]
        %v375 = vld [vmem:[%s315 + $0x2c] sm:$0xf]
        %v376 = vld [vmem:[%s315 + $0x30] sm:$0xf]
        %v377 = vld [vmem:[%s315 + $0x34] sm:$0xf]
        %v378 = vld [vmem:[%s315 + $0x38] sm:$0xf]
        %v379 = vld [vmem:[%s315 + $0x3c] sm:$0xf]
        %v380 = vld [vmem:[%s315 + $0x40] sm:$0xf]
        %v381 = vld [vmem:[%s315 + $0x44] sm:$0xf]
        %v382 = vld [vmem:[%s315 + $0x48] sm:$0xf]
        %v383 = vld [vmem:[%s315 + $0x4c] sm:$0xf]
        %v384 = vld [vmem:[%s315 + $0x50] sm:$0xf]
        %v385 = vld [vmem:[%s315 + $0x54] sm:$0xf]
        %v386 = vld [vmem:[%s315 + $0x58] sm:$0xf]
        %v387 = vld [vmem:[%s315 + $0x5c] sm:$0xf]
        %v388 = vld [vmem:[%s315 + $0x60] sm:$0xf]
        %v389 = vld [vmem:[%s315 + $0x64] sm:$0xf]
        %v390 = vld [vmem:[%s315 + $0x68] sm:$0xf]
        %v391 = vld [vmem:[%s315 + $0x6c] sm:$0xf]
        %v392 = vld [vmem:[%s315 + $0x70] sm:$0xf]
        %v393 = vld [vmem:[%s315 + $0x74] sm:$0xf]
        %v394 = vld [vmem:[%s315 + $0x78] sm:$0xf]
        %v395 = vld [vmem:[%s315 + $0x7c] sm:$0xf]
        %v396 = vld [vmem:[%s360] sm:$0x1]
        %p397 = scmp.eq.s32.totalorder %s33, 0
        // Predicated region
        $region53: #{tpu_custom_call.1} parent=39 // pred_check
          %p398 = pneg %p397
        $region54: #{tpu_custom_call.1} parent=39 // pred_check_branch
          %400 = sbr.rel (%p398) target = $region56
        $region55: #{tpu_custom_call.1} parent=39 // pred_region
          %v401 = vld [vmem:[%s302] sm:$0xf]
          %v402 = vld [vmem:[%s302 + $0x4] sm:$0xf]
          %v403 = vld [vmem:[#allocation6] sm:$0xff]
          %v404 = vld [vmem:[#allocation6 + $0x8] sm:$0xff]
          %v405 = vld [vmem:[#allocation6 + $0x10] sm:$0xff]
          %v406 = vld [vmem:[#allocation6 + $0x18] sm:$0xff]
          %v407 = vld [vmem:[#allocation6 + $0x20] sm:$0xff]
          %v408 = vld [vmem:[#allocation6 + $0x28] sm:$0xff]
          %v409 = vld [vmem:[#allocation6 + $0x30] sm:$0xff]
          %v410 = vld [vmem:[#allocation6 + $0x38] sm:$0xff]
          %v411 = vld [vmem:[#allocation6 + $0x40] sm:$0xff]
          %v412 = vld [vmem:[#allocation6 + $0x48] sm:$0xff]
          %v413 = vld [vmem:[#allocation6 + $0x50] sm:$0xff]
          %v414 = vld [vmem:[#allocation6 + $0x58] sm:$0xff]
          %v415 = vld [vmem:[#allocation6 + $0x60] sm:$0xff]
          %v416 = vld [vmem:[#allocation6 + $0x68] sm:$0xff]
          %v417 = vld [vmem:[#allocation6 + $0x70] sm:$0xff]
          %v418 = vld [vmem:[#allocation6 + $0x78] sm:$0xff]
          %v419 = vld [vmem:[%s2] sm:$0x3]
          %v421 = vlaneseq
          %v422 = vshrl.u32 %v421, 7
          %v423 = vsub.s32 0, %v422
          %v424 = vrot.slane %v419, %v423
          %v425 = vlaneseq
          %v426 = vshrl.u32 %v425, 7
          %v427 = vsub.s32 1, %v426
          %v428 = vrot.slane %v419, %v427
          %v433 = vunpack.c.l.b16 %v401
          %v434 = vunpack.c.l.b16 %v402
          %v435 = vpack.c.b16 %v434, %v433
          %v453 = vunpack.c.l.b16 %v403
          %v454 = vunpack.c.h.b16 %v403
          %v455 = vunpack.c.l.b16 %v404
          %v456 = vunpack.c.h.b16 %v404
          %v457 = vunpack.c.l.b16 %v405
          %v458 = vunpack.c.h.b16 %v405
          %v459 = vunpack.c.l.b16 %v406
          %v460 = vunpack.c.h.b16 %v406
          %v461 = vunpack.c.l.b16 %v407
          %v462 = vunpack.c.h.b16 %v407
          %v463 = vunpack.c.l.b16 %v408
          %v464 = vunpack.c.h.b16 %v408
          %v465 = vunpack.c.l.b16 %v409
          %v466 = vunpack.c.h.b16 %v409
          %v467 = vunpack.c.l.b16 %v410
          %v468 = vunpack.c.h.b16 %v410
          %v469 = vunpack.c.l.b16 %v411
          %v470 = vunpack.c.h.b16 %v411
          %v471 = vunpack.c.l.b16 %v412
          %v472 = vunpack.c.h.b16 %v412
          %v473 = vunpack.c.l.b16 %v413
          %v474 = vunpack.c.h.b16 %v413
          %v475 = vunpack.c.l.b16 %v414
          %v476 = vunpack.c.h.b16 %v414
          %v477 = vunpack.c.l.b16 %v415
          %v478 = vunpack.c.h.b16 %v415
          %v479 = vunpack.c.l.b16 %v416
          %v480 = vunpack.c.h.b16 %v416
          %v481 = vunpack.c.l.b16 %v417
          %v482 = vunpack.c.h.b16 %v417
          %v483 = vunpack.c.l.b16 %v418
          %v484 = vunpack.c.h.b16 %v418
          %v485 = vpack.c.b16 %v455, %v453
          %v486 = vpack.c.b16 %v456, %v454
          %v487 = vpack.c.b16 %v459, %v457
          %v488 = vpack.c.b16 %v460, %v458
          %v489 = vpack.c.b16 %v463, %v461
          %v490 = vpack.c.b16 %v464, %v462
          %v491 = vpack.c.b16 %v467, %v465
          %v492 = vpack.c.b16 %v468, %v466
          %v493 = vpack.c.b16 %v471, %v469
          %v494 = vpack.c.b16 %v472, %v470
          %v495 = vpack.c.b16 %v475, %v473
          %v496 = vpack.c.b16 %v476, %v474
          %v497 = vpack.c.b16 %v479, %v477
          %v498 = vpack.c.b16 %v480, %v478
          %v499 = vpack.c.b16 %v483, %v481
          %v500 = vpack.c.b16 %v484, %v482
          %517 = vmatprep.subr.bf16.mxu0 %v486
          %518 = vmatpush1.bf16.msra.mxu0 %v485
          %519 = vmatprep.subr.bf16.mxu0 %v488
          %520 = vmatpush1.bf16.msra.mxu0 %v487
          %521 = vmatprep.subr.bf16.mxu0 %v490
          %522 = vmatpush1.bf16.msra.mxu0 %v489
          %523 = vmatprep.subr.bf16.mxu0 %v492
          %524 = vmatpush1.bf16.msra.mxu0 %v491
          %525 = vmatprep.subr.bf16.mxu0 %v494
          %526 = vmatpush1.bf16.msra.mxu0 %v493
          %527 = vmatprep.subr.bf16.mxu0 %v496
          %528 = vmatpush1.bf16.msra.mxu0 %v495
          %529 = vmatprep.subr.bf16.mxu0 %v498
          %530 = vmatpush1.bf16.msra.mxu0 %v497
          %531 = vmatprep.subr.bf16.mxu0 %v500
          %532 = vmatpush1.bf16.msra.mxu0 %v499
          %533 = vmatprep.subr.bf16.mxu0 0
          %534 = vmatpush1.bf16.msra.mxu0 0
          %535 = vmatprep.subr.bf16.mxu0 0
          %536 = vmatpush1.bf16.msra.mxu0 0
          %537 = vmatprep.subr.bf16.mxu0 0
          %538 = vmatpush1.bf16.msra.mxu0 0
          %539 = vmatprep.subr.bf16.mxu0 0
          %540 = vmatpush1.bf16.msra.mxu0 0
          %541 = vmatprep.subr.bf16.mxu0 0
          %542 = vmatpush1.bf16.msra.mxu0 0
          %543 = vmatprep.subr.bf16.mxu0 0
          %544 = vmatpush1.bf16.msra.mxu0 0
          %545 = vmatprep.subr.bf16.mxu0 0
          %546 = vmatpush1.bf16.msra.mxu0 0
          %547 = vmatprep.subr.bf16.mxu0 0
          %548 = vmatpush1.bf16.msra.mxu0 0
          %549 = vmatprep.mubr.bf16.mxu0 0
          %550 = vmatmul.mubr.bf16.gmra.mrb[0].mxu0 %v435
          %v551 = vpop.f32.mrb[0].mxu0
          %v552 = vadd.f32 %v424, %v551
          %v553 = vpop.f32.mrb[0].mxu0
          %v554 = vadd.f32 %v428, %v553
          %v555 = vpop.f32.mrb[0].mxu0
          %v556 = vadd.f32 %v424, %v555
          %v557 = vpop.f32.mrb[0].mxu0
          %v558 = vadd.f32 %v428, %v557
          %559 = vdwg.mxu0
          %v560 = vmul.f32 %v552, %v552
          %v561 = vmul.f32 %v554, %v554
          %v562 = vmul.f32 %v556, %v556
          %v563 = vmul.f32 %v558, %v558
          %v564 = vadd.f32 %v560, %v561
          %565 = vadd.xlane.f32.xlu0 %v564
          %v566 = vpop.xlane.xlu0 %565
          %v567 = vadd.f32 %v562, %v563
          %568 = vadd.xlane.f32.xlu0 %v567
          %v569 = vpop.xlane.xlu0 %568
          %v570 = vrsqrt.pop %v566
          %v571 = vmul.f32 %v566, %v570
          %vm572 = vcmp.eq.f32.partialorder %v566, inf
          %v573 = vsel %vm572, %v566, %v571
          %vm574 = vcmp.eq.f32.partialorder %v566, 0.0
          %v575 = vand.u32 %v566, 2147483648
          %v576 = vsel %vm574, %v575, %v573
          %v577 = vrsqrt.pop %v569
          %v578 = vmul.f32 %v569, %v577
          %vm579 = vcmp.eq.f32.partialorder %v569, inf
          %v580 = vsel %vm579, %v569, %v578
          %vm581 = vcmp.eq.f32.partialorder %v569, 0.0
          %v582 = vand.u32 %v569, 2147483648
          %v583 = vsel %vm581, %v582, %v580
          %v584 = vadd.f32 %v576, 1e-08
          %v585 = vadd.f32 %v583, 1e-08
          %v586 = vrcp.pop %v584
          %v587 = vrcp.pop %v585
          %v588 = vmul.f32 %v552, %v586
          %v589 = vmul.f32 %v554, %v586
          %v590 = vmul.f32 %v556, %v587
          %v591 = vmul.f32 %v558, %v587
          %v592 = vpack.c.bf16 %v590, %v588
          %v593 = vpack.c.bf16 %v591, %v589
          %v596 = vunpack.c.l.b16 %v592
          %v597 = vunpack.c.l.b16 %v593
          %v598 = vunpack.c.h.b16 %v592
          %v599 = vunpack.c.h.b16 %v593
          %v600 = vpack.c.b16 %v597, %v596
          %v601 = vpack.c.b16 %v599, %v598
          %604 = vst [vmem:[%s356] sm:$0xff] %v600
          %605 = vst [vmem:[%s356 + $0x8] sm:$0xff] %v601
          %v606 = vpack.c.bf16 %v556, %v552
          %v607 = vpack.c.bf16 %v558, %v554
          %608 = vst [vmem:[#allocation2] sm:$0xff] %v606
          %609 = vst [vmem:[#allocation2 + $0x8] sm:$0xff] %v607
          %v611 = vlaneseq
          %v612 = vshrl.u32 %v611, 7
          %v613 = vsub.s32 0, %v612
          %v614 = vrot.slane %v396, %v613
          %v648 = vunpack.c.l.b16 %v364
          %v649 = vunpack.c.l.b16 %v365
          %v650 = vunpack.c.l.b16 %v366
          %v651 = vunpack.c.l.b16 %v367
          %v652 = vunpack.c.l.b16 %v368
          %v653 = vunpack.c.l.b16 %v369
          %v654 = vunpack.c.l.b16 %v370
          %v655 = vunpack.c.l.b16 %v371
          %v656 = vunpack.c.l.b16 %v372
          %v657 = vunpack.c.l.b16 %v373
          %v658 = vunpack.c.l.b16 %v374
          %v659 = vunpack.c.l.b16 %v375
          %v660 = vunpack.c.l.b16 %v376
          %v661 = vunpack.c.l.b16 %v377
          %v662 = vunpack.c.l.b16 %v378
          %v663 = vunpack.c.l.b16 %v379
          %v664 = vunpack.c.l.b16 %v380
          %v665 = vunpack.c.l.b16 %v381
          %v666 = vunpack.c.l.b16 %v382
          %v667 = vunpack.c.l.b16 %v383
          %v668 = vunpack.c.l.b16 %v384
          %v669 = vunpack.c.l.b16 %v385
          %v670 = vunpack.c.l.b16 %v386
          %v671 = vunpack.c.l.b16 %v387
          %v672 = vunpack.c.l.b16 %v388
          %v673 = vunpack.c.l.b16 %v389
          %v674 = vunpack.c.l.b16 %v390
          %v675 = vunpack.c.l.b16 %v391
          %v676 = vunpack.c.l.b16 %v392
          %v677 = vunpack.c.l.b16 %v393
          %v678 = vunpack.c.l.b16 %v394
          %v679 = vunpack.c.l.b16 %v395
          %v680 = vpack.c.b16 %v649, %v648
          %v681 = vpack.c.b16 %v651, %v650
          %v682 = vpack.c.b16 %v653, %v652
          %v683 = vpack.c.b16 %v655, %v654
          %v684 = vpack.c.b16 %v657, %v656
          %v685 = vpack.c.b16 %v659, %v658
          %v686 = vpack.c.b16 %v661, %v660
          %v687 = vpack.c.b16 %v663, %v662
          %v688 = vpack.c.b16 %v665, %v664
          %v689 = vpack.c.b16 %v667, %v666
          %v690 = vpack.c.b16 %v669, %v668
          %v691 = vpack.c.b16 %v671, %v670
          %v692 = vpack.c.b16 %v673, %v672
          %v693 = vpack.c.b16 %v675, %v674
          %v694 = vpack.c.b16 %v677, %v676
          %v695 = vpack.c.b16 %v679, %v678
          %712 = vmatprep.subr.bf16.mxu0 0
          %713 = vmatpush1.bf16.msra.mxu0 %v680
          %714 = vmatprep.subr.bf16.mxu0 0
          %715 = vmatpush1.bf16.msra.mxu0 %v681
          %716 = vmatprep.subr.bf16.mxu0 0
          %717 = vmatpush1.bf16.msra.mxu0 %v682
          %718 = vmatprep.subr.bf16.mxu0 0
          %719 = vmatpush1.bf16.msra.mxu0 %v683
          %720 = vmatprep.subr.bf16.mxu0 0
          %721 = vmatpush1.bf16.msra.mxu0 %v684
          %722 = vmatprep.subr.bf16.mxu0 0
          %723 = vmatpush1.bf16.msra.mxu0 %v685
          %724 = vmatprep.subr.bf16.mxu0 0
          %725 = vmatpush1.bf16.msra.mxu0 %v686
          %726 = vmatprep.subr.bf16.mxu0 0
          %727 = vmatpush1.bf16.msra.mxu0 %v687
          %728 = vmatprep.subr.bf16.mxu0 0
          %729 = vmatpush1.bf16.msra.mxu0 %v688
          %730 = vmatprep.subr.bf16.mxu0 0
          %731 = vmatpush1.bf16.msra.mxu0 %v689
          %732 = vmatprep.subr.bf16.mxu0 0
          %733 = vmatpush1.bf16.msra.mxu0 %v690
          %734 = vmatprep.subr.bf16.mxu0 0
          %735 = vmatpush1.bf16.msra.mxu0 %v691
          %736 = vmatprep.subr.bf16.mxu0 0
          %737 = vmatpush1.bf16.msra.mxu0 %v692
          %738 = vmatprep.subr.bf16.mxu0 0
          %739 = vmatpush1.bf16.msra.mxu0 %v693
          %740 = vmatprep.subr.bf16.mxu0 0
          %741 = vmatpush1.bf16.msra.mxu0 %v694
          %742 = vmatprep.subr.bf16.mxu0 0
          %743 = vmatpush1.bf16.msra.mxu0 %v695
          %744 = vmatprep.mubr.bf16.mxu0 %v607
          %745 = vmatmul.mubr.bf16.gmra.mrb[0].mxu0 %v606
          %v746 = vpop.f32.mrb[0].mxu0
          %v747 = vadd.f32 %v614, %v746
          %v748 = vpop.f32.mrb[0].mxu0
          %v749 = vpop.f32.mrb[0].mxu0
          %v750 = vadd.f32 %v614, %v749
          %v751 = vpop.f32.mrb[0].mxu0
          %752 = vdwg.mxu0
          %753 = vst [vmem:[%s349] sm:$0xff] %v747
          %754 = vst [vmem:[%s349 + $0x8] sm:$0xff] %v750
        $region56: #{tpu_custom_call.1} parent=39 // pred_fallthru
          _
        %p755 = scmp.ne.s32.totalorder %s33, 0
        // Predicated region
        $region57: #{tpu_custom_call.1} parent=39 // pred_check
          %p756 = pneg %p755
        $region58: #{tpu_custom_call.1} parent=39 // pred_check_branch
          %758 = sbr.rel (%p756) target = $region60
        $region59: #{tpu_custom_call.1} parent=39 // pred_region
          %v759 = vld [vmem:[#allocation2] sm:$0xff]
          %v760 = vld [vmem:[#allocation2 + $0x8] sm:$0xff]
          %v762 = vlaneseq
          %v763 = vshrl.u32 %v762, 7
          %v764 = vsub.s32 0, %v763
          %v765 = vrot.slane %v396, %v764
          %v799 = vunpack.c.l.b16 %v364
          %v800 = vunpack.c.l.b16 %v365
          %v801 = vunpack.c.l.b16 %v366
          %v802 = vunpack.c.l.b16 %v367
          %v803 = vunpack.c.l.b16 %v368
          %v804 = vunpack.c.l.b16 %v369
          %v805 = vunpack.c.l.b16 %v370
          %v806 = vunpack.c.l.b16 %v371
          %v807 = vunpack.c.l.b16 %v372
          %v808 = vunpack.c.l.b16 %v373
          %v809 = vunpack.c.l.b16 %v374
          %v810 = vunpack.c.l.b16 %v375
          %v811 = vunpack.c.l.b16 %v376
          %v812 = vunpack.c.l.b16 %v377
          %v813 = vunpack.c.l.b16 %v378
          %v814 = vunpack.c.l.b16 %v379
          %v815 = vunpack.c.l.b16 %v380
          %v816 = vunpack.c.l.b16 %v381
          %v817 = vunpack.c.l.b16 %v382
          %v818 = vunpack.c.l.b16 %v383
          %v819 = vunpack.c.l.b16 %v384
          %v820 = vunpack.c.l.b16 %v385
          %v821 = vunpack.c.l.b16 %v386
          %v822 = vunpack.c.l.b16 %v387
          %v823 = vunpack.c.l.b16 %v388
          %v824 = vunpack.c.l.b16 %v389
          %v825 = vunpack.c.l.b16 %v390
          %v826 = vunpack.c.l.b16 %v391
          %v827 = vunpack.c.l.b16 %v392
          %v828 = vunpack.c.l.b16 %v393
          %v829 = vunpack.c.l.b16 %v394
          %v830 = vunpack.c.l.b16 %v395
          %v831 = vpack.c.b16 %v800, %v799
          %v832 = vpack.c.b16 %v802, %v801
          %v833 = vpack.c.b16 %v804, %v803
          %v834 = vpack.c.b16 %v806, %v805
          %v835 = vpack.c.b16 %v808, %v807
          %v836 = vpack.c.b16 %v810, %v809
          %v837 = vpack.c.b16 %v812, %v811
          %v838 = vpack.c.b16 %v814, %v813
          %v839 = vpack.c.b16 %v816, %v815
          %v840 = vpack.c.b16 %v818, %v817
          %v841 = vpack.c.b16 %v820, %v819
          %v842 = vpack.c.b16 %v822, %v821
          %v843 = vpack.c.b16 %v824, %v823
          %v844 = vpack.c.b16 %v826, %v825
          %v845 = vpack.c.b16 %v828, %v827
          %v846 = vpack.c.b16 %v830, %v829
          %863 = vmatprep.subr.bf16.mxu0 0
          %864 = vmatpush1.bf16.msra.mxu0 %v831
          %865 = vmatprep.subr.bf16.mxu0 0
          %866 = vmatpush1.bf16.msra.mxu0 %v832
          %867 = vmatprep.subr.bf16.mxu0 0
          %868 = vmatpush1.bf16.msra.mxu0 %v833
          %869 = vmatprep.subr.bf16.mxu0 0
          %870 = vmatpush1.bf16.msra.mxu0 %v834
          %871 = vmatprep.subr.bf16.mxu0 0
          %872 = vmatpush1.bf16.msra.mxu0 %v835
          %873 = vmatprep.subr.bf16.mxu0 0
          %874 = vmatpush1.bf16.msra.mxu0 %v836
          %875 = vmatprep.subr.bf16.mxu0 0
          %876 = vmatpush1.bf16.msra.mxu0 %v837
          %877 = vmatprep.subr.bf16.mxu0 0
          %878 = vmatpush1.bf16.msra.mxu0 %v838
          %879 = vmatprep.subr.bf16.mxu0 0
          %880 = vmatpush1.bf16.msra.mxu0 %v839
          %881 = vmatprep.subr.bf16.mxu0 0
          %882 = vmatpush1.bf16.msra.mxu0 %v840
          %883 = vmatprep.subr.bf16.mxu0 0
          %884 = vmatpush1.bf16.msra.mxu0 %v841
          %885 = vmatprep.subr.bf16.mxu0 0
          %886 = vmatpush1.bf16.msra.mxu0 %v842
          %887 = vmatprep.subr.bf16.mxu0 0
          %888 = vmatpush1.bf16.msra.mxu0 %v843
          %889 = vmatprep.subr.bf16.mxu0 0
          %890 = vmatpush1.bf16.msra.mxu0 %v844
          %891 = vmatprep.subr.bf16.mxu0 0
          %892 = vmatpush1.bf16.msra.mxu0 %v845
          %893 = vmatprep.subr.bf16.mxu0 0
          %894 = vmatpush1.bf16.msra.mxu0 %v846
          %895 = vmatprep.mubr.bf16.mxu0 %v760
          %896 = vmatmul.mubr.bf16.gmra.mrb[0].mxu0 %v759
          %v897 = vpop.f32.mrb[0].mxu0
          %v898 = vadd.f32 %v765, %v897
          %v899 = vpop.f32.mrb[0].mxu0
          %v900 = vpop.f32.mrb[0].mxu0
          %v901 = vadd.f32 %v765, %v900
          %v902 = vpop.f32.mrb[0].mxu0
          %903 = vdwg.mxu0
          %904 = vst [vmem:[%s349] sm:$0xff] %v898
          %905 = vst [vmem:[%s349 + $0x8] sm:$0xff] %v901
        $region60: #{tpu_custom_call.1} parent=39 // pred_fallthru
          _
        %s906 = sand.u32 %s170, 1
        %s907 = scalar_lea.sflag [#allocation5], %s906
        %s908 = sand.u32 %s170, 1
        %s909 = smul.addr %s908, 16
        %s910 = scalar_lea.vmem [#allocation9], %s909
        %s911 = sand.u32 %s196, 1
        %s912 = scalar_lea.sflag [#allocation11], %s911
        %s913 = sand.u32 %s196, 1
        %s914 = smul.addr %s913, 16
        %s915 = scalar_lea.vmem [#allocation10], %s914
        // Predicated region
        $region61: #{tpu_custom_call.1} parent=39 // pred_check
          %p916 = pneg %p180
        $region62: #{tpu_custom_call.1} parent=39 // pred_check_branch
          %918 = sbr.rel (%p916) target = $region64
        $region63: #{tpu_custom_call.1} parent=39 // pred_region
          %s919 = smul.u32 2, %s32
          %s921 = ssub.s32 256, 256
          %922 = vsyncadd %s907, %s921
          %s923 = smul.addr %s919, 2
          %s924 = sadd.s32 %s33, %s923
          %s925 = smul.addr %s924, 128
          %s926 = scalar_lea.hbm %s5, %s925
          %s927 = sshll.u32 %s910, 4
          %s928 = int_to_ptr.vmem [resolvable:$true] %s927
          %933 = dma.vmem_to_hbm [thread:$0]  %s928, 256, %s926, %s907, 128, 256, 8
        $region64: #{tpu_custom_call.1} parent=39 // pred_fallthru
          _
        // Predicated region
        $region65: #{tpu_custom_call.1} parent=39 // pred_check
          %p934 = pneg %p206
        $region66: #{tpu_custom_call.1} parent=39 // pred_check_branch
          %936 = sbr.rel (%p934) target = $region68
        $region67: #{tpu_custom_call.1} parent=39 // pred_region
          %s937 = smul.u32 2, %s32
          %s939 = ssub.s32 256, 256
          %940 = vsyncadd %s912, %s939
          %s941 = smul.addr %s937, 2
          %s942 = smul.addr %s941, 64
          %s943 = scalar_lea.hbm %s6, %s942
          %s944 = sshll.u32 %s915, 4
          %s945 = int_to_ptr.vmem [resolvable:$true] %s944
          %950 = dma.vmem_to_hbm [thread:$0]  %s945, 256, %s943, %s912, 128, 128, 8
        $region68: #{tpu_custom_call.1} parent=39 // pred_fallthru
          _
      $region40: #{tpu_custom_call.1} parent=5 // pred_fallthru
        _
      %p951 = scmp.le.s32.totalorder 2, %s23
      // Predicated region
      $region69: #{tpu_custom_call.1} parent=5 // pred_check
        %p952 = pneg %p951
      $region70: #{tpu_custom_call.1} parent=5 // pred_check_branch
        %954 = sbr.rel (%p952) target = $region72
      $region71: #{tpu_custom_call.1} parent=5 // pred_region
        %s955 = ssub.s32 %s23, 2
        // Predicated region
        $region73: #{tpu_custom_call.1} parent=71 // pred_check
          %p956 = pneg %p186
        $region74: #{tpu_custom_call.1} parent=71 // pred_check_branch
          %958 = sbr.rel (%p956) target = $region76
        $region75: #{tpu_custom_call.1} parent=71 // pred_region
          %s959 = sand.u32 %s171, 1
          %s960 = scalar_lea.sflag [#allocation5], %s959
          %s961 = sand.u32 %s171, 1
          %s962 = smul.addr %s961, 16
          %s963 = scalar_lea.vmem [#allocation9], %s962
          %964 = dma.done %s960, 256
        $region76: #{tpu_custom_call.1} parent=71 // pred_fallthru
          _
        // Predicated region
        $region77: #{tpu_custom_call.1} parent=71 // pred_check
          %p965 = pneg %p212
        $region78: #{tpu_custom_call.1} parent=71 // pred_check_branch
          %967 = sbr.rel (%p965) target = $region80
        $region79: #{tpu_custom_call.1} parent=71 // pred_region
          %s968 = sand.u32 %s197, 1
          %s969 = scalar_lea.sflag [#allocation11], %s968
          %s970 = sand.u32 %s197, 1
          %s971 = smul.addr %s970, 16
          %s972 = scalar_lea.vmem [#allocation10], %s971
          %973 = dma.done %s969, 256
        $region80: #{tpu_custom_call.1} parent=71 // pred_fallthru
          _
      $region72: #{tpu_custom_call.1} parent=5 // pred_fallthru
        _
    $region6: #{tpu_custom_call.1} parent=1 // loop_footer
      %s27 = sadd.s32 1, %s23
    $region7: #{tpu_custom_call.1} parent=1 // loop_footer_branch
      %22 = sbr.rel target = $region3
    $region8: #{tpu_custom_call.1} parent=1 // loop_exit
      _
    %974 = vsyncpa [#allocation4], 1
    %s975 = scalar_lea.sflag [#allocation4], 1
    %976 = vsyncpa %s975, 1
    %977 = vsyncpa [#allocation7], 1
    %978 = vsyncpa [#allocation5], 1
    %s979 = scalar_lea.sflag [#allocation5], 1
    %980 = vsyncpa %s979, 1
    %981 = vsyncpa [#allocation11], 1
    %s982 = scalar_lea.sflag [#allocation11], 1
    %983 = vsyncpa %s982, 1

</llo_original>
